<compile_context>
chip_gen: v6e
topology: v6e:2x2x1
jax: 0.10.0
libtpu: 0.0.40
codegen_flags: <defaults>
</compile_context>

<pallas_src>
import math

import jax
import jax.numpy as jnp
from jax.experimental import pallas as pl
from jax.experimental.pallas import tpu as pltpu


def _copy_kernel(x_ref, o_ref):
    # Identity copy of the current VMEM tile.
    o_ref[...] = x_ref[...]


# Tunables (bytes).  Per-tile cap keeps in+out double-buffered footprint
# (4 buffers) around 8 MiB — comfortably inside every chip's scoped VMEM.
_MAX_TILE_BYTES = 2 * 1024 * 1024
_SMALL_BYTES = 128 * 1024  # below this, one full block (no grid) is cheapest


def _pallas_flat_copy(flat):
    """Copy a 1-D array through VMEM with a tiled Pallas identity kernel."""
    n = flat.shape[0]
    if n == 0:
        return flat
    itemsize = jnp.dtype(flat.dtype).itemsize
    # sublane packing multiple: 8 for 32-bit, 16 for bf16/f16, 32 for int8/fp8
    packing = 8 * max(1, 4 // itemsize)
    total_bytes = n * itemsize

    # --- small case: single full block (block shape == array shape is legal) ---
    if total_bytes <= _SMALL_BYTES:
        if n % 128 == 0:
            rows, lane = n // 128, 128
        else:
            rows, lane = 1, n
        x2d = flat.reshape(rows, lane)
        out2d = pl.pallas_call(
            _copy_kernel,
            out_shape=jax.ShapeDtypeStruct((rows, lane), flat.dtype),
            in_specs=[pl.BlockSpec((rows, lane), lambda: (0, 0))],
            out_specs=pl.BlockSpec((rows, lane), lambda: (0, 0)),
            cost_estimate=pl.CostEstimate(
                flops=0, transcendentals=0, bytes_accessed=2 * total_bytes),
        )(x2d)
        return out2d.reshape(n)

    # --- large case: lane-dense 2-D canvas, big tiles, pipelined grid ---
    lane = None
    for cand in (4096, 2048, 1024, 512, 256, 128):
        if n % cand == 0:
            lane = cand
            break
    if lane is None:
        lane = 1024  # ragged: will pad below

    chunk = lane * packing
    padded_n = n
    if padded_n % chunk != 0:
        # Pad up to a whole tile-row multiple so every block is full-width and
        # sublane-aligned (restores pipelining; bounds VMEM for ragged sizes).
        padded_n = ((n + chunk - 1) // chunk) * chunk
        flat = jnp.pad(flat, (0, padded_n - n))

    rows = padded_n // lane  # guaranteed multiple of `packing`
    max_rows = max(packing,
                   (_MAX_TILE_BYTES // (lane * itemsize)) // packing * packing)
    tile_rows = packing
    r = max_rows
    while r >= packing:
        if rows % r == 0:
            tile_rows = r
            break
        r -= packing

    x2d = flat.reshape(rows, lane)
    out2d = pl.pallas_call(
        _copy_kernel,
        out_shape=jax.ShapeDtypeStruct((rows, lane), flat.dtype),
        grid_spec=pltpu.PrefetchScalarGridSpec(
            num_scalar_prefetch=0,
            grid=(rows // tile_rows,),
            in_specs=[pl.BlockSpec((tile_rows, lane), lambda i: (i, 0))],
            out_specs=pl.BlockSpec((tile_rows, lane), lambda i: (i, 0)),
        ),
        compiler_params=pltpu.CompilerParams(
            dimension_semantics=("parallel",),  # lets v7x shard over 2 TCs
        ),
        cost_estimate=pl.CostEstimate(
            flops=0, transcendentals=0,
            bytes_accessed=2 * padded_n * itemsize),
    )(x2d)
    out = out2d.reshape(padded_n)
    if padded_n != n:
        out = out[:n]
    return out


class View:
    """JAX/Pallas equivalent of the PyTorch View module.

    materialize=False gives the true torch-.view semantics (metadata-only
    reshape, zero HBM traffic — the recommended production path).
    materialize=True routes the data through the Pallas identity-copy kernel.
    """

    def __init__(self, view, materialize=True):
        self.view = tuple(view)
        self.materialize = materialize

    def _resolve_shape(self, total):
        shape = list(self.view)
        if -1 in shape:
            idx = shape.index(-1)
            known = math.prod(d for d in shape if d != -1)
            shape[idx] = total // known
        assert math.prod(shape) == total, "view shape incompatible with input"
        return tuple(shape)

    def __call__(self, x):
        total = math.prod(x.shape)
        target = self._resolve_shape(total)
        if not self.materialize:
            # Metadata-only, exactly like torch .view on contiguous data.
            return jnp.reshape(x, target)
        flat = jnp.reshape(x, (total,))          # row-major flatten (C-order)
        flat = _pallas_flat_copy(flat)           # Pallas identity copy
        return jnp.reshape(flat, target)


if __name__ == "__main__":
    key = jax.random.PRNGKey(0)

    # Primary test: NCHW input as a VAE encoder would flatten before the FC.
    x = jax.random.normal(key, (2, 4, 16, 16), dtype=jnp.float32)
    view = View((2, -1))                      # Pallas kernel path (small block)
    y = jax.block_until_ready(view(x))
    ref = jnp.reshape(x, (2, 4 * 16 * 16))
    assert y.shape == (2, 1024) and y.dtype == x.dtype
    assert bool(jnp.all(y == ref))

    # Exercise the tiled (gridded) large path.
    x2 = jax.random.normal(key, (2, 8, 64, 64), dtype=jnp.float32)  # 256 KiB
    y2 = jax.block_until_ready(View((2, -1))(x2))
    assert bool(jnp.all(y2 == jnp.reshape(x2, (2, 8 * 64 * 64))))

    # Exercise a ragged (non-multiple-of-128) size.
    x3 = jax.random.normal(key, (3, 5, 7), dtype=jnp.float32)
    y3 = jax.block_until_ready(View((-1,))(x3))
    assert bool(jnp.all(y3 == jnp.reshape(x3, (105,))))

    # Metadata-only path (the recommended zero-cost view).
    y4 = jax.block_until_ready(View((2, -1), materialize=False)(x))
    assert bool(jnp.all(y4 == ref))

    print("KERNEL_OK")
</pallas_src>

<mosaic_0001>
module attributes {stable_mosaic.version = 11 : i64} {
  func.func @_copy_kernel(%arg0: memref<16x128xf32, #tpu.memory_space<vmem>>, %arg1: memref<16x128xf32, #tpu.memory_space<vmem>>) attributes {dimension_semantics = [], scalar_prefetch = 0 : i64, scratch_operands = 0 : i64, tpu.core_type = #tpu.core_type<tc>} {
    %c0 = arith.constant 0 : index
    %c0_0 = arith.constant 0 : index
    %0 = vector.load %arg0[%c0, %c0_0] : memref<16x128xf32, #tpu.memory_space<vmem>>, vector<16x128xf32>
    %c0_1 = arith.constant 0 : index
    %c0_2 = arith.constant 0 : index
    %1 = vector.load %arg1[%c0_1, %c0_2] : memref<16x128xf32, #tpu.memory_space<vmem>>, vector<16x128xf32>
    tpu.vector_store %arg1[%c0_1, %c0_2], %0 {strides = array<i32>} : memref<16x128xf32, #tpu.memory_space<vmem>>, vector<16x128xf32>,
    return
  }
}

</mosaic_0001>

<llo_original>
// kernel: tpu_custom_call.1
$region0: #{tpu_custom_call.1}
  #allocation0 [shape = 'u32[]', space=smem, size = 0x4, offset = 0x4, fixed_abs, tag = 'smem constant byte address 0x4 - core index']
  #allocation1 [shape = 'u32[144,128]{1,0:T(1,128)}', space=vmem, size = 0x12000, scoped, tag = 'internal scratch']
  %s0 = inlined_call_operand.hbm [shape: f32[16,128], index: 0, kind: input, shape index: {}]
  %s1 = inlined_call_operand.hbm [shape: f32[16,128], index: 1, kind: output, shape index: {}]
  %s2 = sld [smem:[#allocation0]]
  $region18: #{tpu_custom_call.1} parent=0
    _
  %s4 = ssub.s32 1, %s2
  %s5 = scalar_select 0, %s4, %s2
  $region1: #{tpu_custom_call.1} parent=0
    #allocation2 [shape = 'u8[8192]{0}', space=vmem, size = 0x2000, scoped, tag = 'input window, operand 0, single buffered']
    #allocation3 [shape = 's32[1]{0}', space=sflag, size = 0x4, scoped, tag = 'scoped memory for tpu_custom_call.1']
    #allocation4 [shape = 's32[1]{0}', space=sflag, size = 0x4, scoped, tag = 'scoped memory for tpu_custom_call.1']
    #allocation5 [shape = 'u8[8192]{0}', space=vmem, size = 0x2000, scoped, tag = 'output window, operand 0, single buffered']
    %6 = vsyncpa [#allocation3], 0
    %7 = vsyncpa [#allocation4], 0
    // Predicated region
    $region2: #{tpu_custom_call.1} parent=1 // pred_check
      _
    $region3: #{tpu_custom_call.1} parent=1 // pred_check_branch
      %9 = sbr.rel (0) target = $region5
    $region4: #{tpu_custom_call.1} parent=1 // pred_region
      %s11 = ssub.s32 256, 256
      %12 = vsyncadd [#allocation3], %s11
      %s13 = sshll.u32 [#allocation2], 4
      %s14 = int_to_ptr.vmem [resolvable:$true] %s13
      %19 = dma.hbm_to_vmem [thread:$0]  %s0, 256, %s14, [#allocation3], 128, 128, 8
    $region5: #{tpu_custom_call.1} parent=1 // pred_fallthru
      _
    // Predicated region
    $region6: #{tpu_custom_call.1} parent=1 // pred_check
      _
    $region7: #{tpu_custom_call.1} parent=1 // pred_check_branch
      %21 = sbr.rel (0) target = $region9
    $region8: #{tpu_custom_call.1} parent=1 // pred_region
      %22 = dma.done [#allocation3], 256
    $region9: #{tpu_custom_call.1} parent=1 // pred_fallthru
      _
    %v23 = vld [vmem:[#allocation2] sm:$0xff]
    %v24 = vld [vmem:[#allocation2 + $0x8] sm:$0xff]
    %25 = vst [vmem:[#allocation5] sm:$0xff] %v23
    %26 = vst [vmem:[#allocation5 + $0x8] sm:$0xff] %v24
    // Predicated region
    $region10: #{tpu_custom_call.1} parent=1 // pred_check
      _
    $region11: #{tpu_custom_call.1} parent=1 // pred_check_branch
      %28 = sbr.rel (0) target = $region13
    $region12: #{tpu_custom_call.1} parent=1 // pred_region
      %s30 = ssub.s32 256, 256
      %31 = vsyncadd [#allocation4], %s30
      %s32 = sshll.u32 [#allocation5], 4
      %s33 = int_to_ptr.vmem [resolvable:$true] %s32
      %38 = dma.vmem_to_hbm [thread:$0]  %s33, 256, %s1, [#allocation4], 128, 128, 8
    $region13: #{tpu_custom_call.1} parent=1 // pred_fallthru
      _
    // Predicated region
    $region14: #{tpu_custom_call.1} parent=1 // pred_check
      _
    $region15: #{tpu_custom_call.1} parent=1 // pred_check_branch
      %40 = sbr.rel (0) target = $region17
    $region16: #{tpu_custom_call.1} parent=1 // pred_region
      %41 = dma.done [#allocation4], 256
    $region17: #{tpu_custom_call.1} parent=1 // pred_fallthru
      _
    %42 = vsyncpa [#allocation3], 1
    %43 = vsyncpa [#allocation4], 1

</llo_original>
